<compile_context>
chip_gen: v7x
topology: tpu7x:2x2x1
jax: 0.10.0
libtpu: 0.0.40
codegen_flags: <defaults>
</compile_context>

<pallas_src>
import functools

import jax
import jax.numpy as jnp
from jax.experimental import pallas as pl
from jax.experimental.pallas import tpu as pltpu


def _round_up(n, m):
    return ((n + m - 1) // m) * m


def _iter_step_kernel(x_ref, t_ref, w_ref, b_ref, loss_ref, *rest,
                      lr, inv_batch, num_classes, padded_classes,
                      has_row_pad, train):
    if train:
        w_out_ref, b_out_ref, w_bf16, dw_acc, db_acc, loss_acc = rest
    else:
        w_bf16, loss_acc = rest

    step = pl.program_id(0)
    last = pl.num_programs(0) - 1

    @pl.when(step == 0)
    def _init():
        loss_acc[...] = jnp.zeros_like(loss_acc)
        # Cast the resident f32 master weights to bf16 once; all batch tiles reuse
        # the cached MXU operand (saves a (D, Cp) VALU cast per grid step).
        w_bf16[...] = w_ref[...].astype(jnp.bfloat16)
        if train:
            dw_acc[...] = jnp.zeros_like(dw_acc)
            db_acc[...] = jnp.zeros_like(db_acc)

    x = x_ref[...]                               # (TB, D)  bf16 (streamed MXU operand)
    b = b_ref[...]                               # (1, Cp)  f32
    t = t_ref[...]                               # (TB, 1)  int32, -1 => padded row

    # ---- forward: logits = x @ W + b  (bf16 MXU, f32 accumulate) ----
    logits = jnp.dot(x, w_bf16[...],
                     preferred_element_type=jnp.float32) + b        # (TB, Cp)

    col = jax.lax.broadcasted_iota(jnp.int32, logits.shape, 1)
    if num_classes != padded_classes:
        # mask padded class lanes (lane-padding to 128)
        logits = jnp.where(col < num_classes, logits, -1e30)

    # ---- CrossEntropyLoss (mean reduction), numerically stable ----
    m = jnp.max(logits, axis=-1, keepdims=True)                      # (TB, 1)
    z = logits - m
    ez = jnp.exp(z)                                                  # padded cols -> 0
    sez = jnp.sum(ez, axis=-1, keepdims=True)                        # (TB, 1)

    onehot = (col == t).astype(jnp.float32)                          # (TB, Cp)
    tgt_logit = jnp.sum(onehot * logits, axis=-1, keepdims=True)     # (TB, 1)
    nll = jnp.log(sez) + m - tgt_logit                               # (TB, 1)

    if has_row_pad:
        row_valid = (t >= 0).astype(jnp.float32)                     # (TB, 1)
        nll = nll * row_valid

    loss_acc[...] = loss_acc[...] + jnp.sum(nll) * inv_batch

    if train:
        # ---- backward (analytic softmax + CE gradients) ----
        inv_sez = pl.reciprocal(sez, approx=True)                    # EUP slot
        probs = ez * inv_sez                                         # (TB, Cp)
        if has_row_pad:
            scale = row_valid * inv_batch
        else:
            scale = inv_batch
        dlogits = (probs - onehot) * scale                           # (TB, Cp) f32
        # dW += x^T @ dlogits (contract over batch), bf16 MXU operands, f32 acc
        dw_acc[...] += jax.lax.dot_general(
            x, dlogits.astype(jnp.bfloat16),
            dimension_numbers=(((0,), (0,)), ((), ())),
            preferred_element_type=jnp.float32)                      # (D, Cp)
        db_acc[...] += jnp.sum(dlogits, axis=0, keepdims=True)       # (1, Cp)

        # ---- SGD step (once, after all batch tiles) ----
        @pl.when(step == last)
        def _update():
            w_out_ref[...] = w_ref[...] - lr * dw_acc[...]
            b_out_ref[...] = b - lr * db_acc[...]

    @pl.when(step == last)
    def _emit_loss():
        loss_ref[...] = loss_acc[...]


def iter_step(params, batch, *, lr=0.1, train=True, tile_batch=None):
    """JAX/Pallas equivalent of IterStep.forward for Linear + CrossEntropy + SGD.

    params : (w, b) with w: (D, C) float32 (torch Linear weight transposed),
             b: (1, C) float32
    batch  : (inputs, targets) with inputs: (B, D) float32, targets: (B,) int
    Returns (loss_scalar, new_params).
    """
    if batch is None:
        raise ValueError("Loader can't be None")
    x, targets = batch
    w, b = params
    B, D = x.shape
    C = w.shape[1]

    LANE = 128
    Cp = _round_up(C, LANE)                       # lane-dense class dim
    if tile_batch is None:
        TB = 256 if B >= 256 else (128 if B >= 128 else _round_up(B, 8))
    else:
        TB = min(_round_up(int(tile_batch), 8), _round_up(B, 8))
    Bp = _round_up(B, TB)
    n_tiles = Bp // TB

    # Pad + cast the streamed MXU operand to bf16; pad classes for w/b; pad rows
    # with target = -1 so they are masked out of loss and gradients.
    x_p = jnp.zeros((Bp, D), jnp.bfloat16).at[:B].set(x.astype(jnp.bfloat16))
    t_p = jnp.full((Bp, 1), -1, jnp.int32).at[:B, 0].set(targets.astype(jnp.int32))
    w_p = jnp.zeros((D, Cp), jnp.float32).at[:, :C].set(w.astype(jnp.float32))
    b_p = jnp.zeros((1, Cp), jnp.float32).at[:, :C].set(b.astype(jnp.float32))

    kernel = functools.partial(
        _iter_step_kernel, lr=float(lr), inv_batch=1.0 / B,
        num_classes=C, padded_classes=Cp, has_row_pad=(Bp != B),
        train=bool(train))

    in_specs = [
        pl.BlockSpec((TB, D), lambda i: (i, 0)),     # x: streamed batch tiles
        pl.BlockSpec((TB, 1), lambda i: (i, 0)),     # targets: streamed batch tiles
        pl.BlockSpec((D, Cp), lambda i: (0, 0)),     # w: resident across the grid
        pl.BlockSpec((1, Cp), lambda i: (0, 0)),     # b: resident across the grid
    ]
    loss_spec = pl.BlockSpec((1, 1), lambda i: (0, 0))

    if train:
        out_shape = (
            jax.ShapeDtypeStruct((1, 1), jnp.float32),
            jax.ShapeDtypeStruct((D, Cp), jnp.float32),
            jax.ShapeDtypeStruct((1, Cp), jnp.float32),
        )
        out_specs = (
            loss_spec,
            pl.BlockSpec((D, Cp), lambda i: (0, 0)),
            pl.BlockSpec((1, Cp), lambda i: (0, 0)),
        )
        scratch = [
            pltpu.VMEM((D, Cp), jnp.bfloat16),       # cached bf16 weight (MXU operand)
            pltpu.VMEM((D, Cp), jnp.float32),        # dW accumulator
            pltpu.VMEM((1, Cp), jnp.float32),        # db accumulator
            pltpu.VMEM((1, 1), jnp.float32),         # loss accumulator
        ]
        io_aliases = {2: 1, 3: 2}                    # w -> w_new, b -> b_new (in-place SGD)
    else:
        # eval: only the loss leaves the kernel -- no weight HBM round-trip
        out_shape = (jax.ShapeDtypeStruct((1, 1), jnp.float32),)
        out_specs = (loss_spec,)
        scratch = [
            pltpu.VMEM((D, Cp), jnp.bfloat16),       # cached bf16 weight
            pltpu.VMEM((1, 1), jnp.float32),         # loss accumulator
        ]
        io_aliases = {}

    results = pl.pallas_call(
        kernel,
        out_shape=out_shape,
        grid_spec=pltpu.PrefetchScalarGridSpec(
            num_scalar_prefetch=0,
            grid=(n_tiles,),
            in_specs=in_specs,
            out_specs=out_specs,
            scratch_shapes=scratch,
        ),
        input_output_aliases=io_aliases,
        compiler_params=pltpu.CompilerParams(
            dimension_semantics=("arbitrary",)),     # batch axis carries accumulators
    )(x_p, t_p, w_p, b_p)

    if train:
        loss, w_new_p, b_new_p = results
        if Cp != C:
            new_params = (w_new_p[:, :C], b_new_p[:, :C])
        else:
            new_params = (w_new_p, b_new_p)
    else:
        (loss,) = results
        new_params = params
    return loss[0, 0], new_params


def _reference(params, batch, lr, train):
    """Pure-JAX reference matching the kernel's bf16-MXU / f32-accumulate numerics."""
    x, targets = batch
    w, b = params
    B = x.shape[0]
    xb = x.astype(jnp.bfloat16).astype(jnp.float32)
    wb = w.astype(jnp.bfloat16).astype(jnp.float32)
    logits = xb @ wb + b
    log_probs = jax.nn.log_softmax(logits, axis=-1)
    onehot = jax.nn.one_hot(targets, logits.shape[-1], dtype=jnp.float32)
    loss = -jnp.mean(jnp.sum(onehot * log_probs, axis=-1))
    if not train:
        return loss, params
    probs = jax.nn.softmax(logits, axis=-1)
    dlogits = (probs - onehot) / B
    dW = xb.T @ dlogits.astype(jnp.bfloat16).astype(jnp.float32)
    db = jnp.sum(dlogits, axis=0, keepdims=True)
    return loss, (w - lr * dW, b - lr * db)


if __name__ == "__main__":
    # Small deterministic problem: batch=8, features=32, classes=8.
    B, D, C = 8, 32, 8
    lr = 0.1

    key = jax.random.PRNGKey(0)
    kx, kw, kb, kt, kx2, kt2 = jax.random.split(key, 6)
    x = jax.random.normal(kx, (B, D), dtype=jnp.float32)
    targets = jax.random.randint(kt, (B,), 0, C, dtype=jnp.int32)
    w = jax.random.normal(kw, (D, C), dtype=jnp.float32) * (1.0 / jnp.sqrt(D))
    b = jax.random.normal(kb, (1, C), dtype=jnp.float32) * 0.01
    params = (w, b)
    batch = (x, targets)

    # train step (forward + CE loss + backward + in-place SGD step)
    loss, new_params = iter_step(params, batch, lr=lr, train=True)
    jax.block_until_ready((loss, new_params))

    # eval step (loss only; params untouched, no weight writeback)
    eval_loss, eval_params = iter_step(params, batch, lr=lr, train=False)
    jax.block_until_ready(eval_loss)

    # correctness check (bf16 MXU + approx reciprocal => loosened tolerance)
    ref_loss, (ref_w, ref_b) = _reference(params, batch, lr, True)
    assert jnp.allclose(loss, ref_loss, atol=5e-3, rtol=5e-3)
    assert jnp.allclose(eval_loss, ref_loss, atol=5e-3, rtol=5e-3)
    assert jnp.allclose(new_params[0], ref_w, atol=5e-3, rtol=5e-3)
    assert jnp.allclose(new_params[1], ref_b, atol=5e-3, rtol=5e-3)
    assert eval_params is params

    # multi-tile path: batch streamed in 4 grid steps; loss / dW / db accumulate
    # across tiles in VMEM scratch before the single SGD update.
    B2 = 32
    x2 = jax.random.normal(kx2, (B2, D), dtype=jnp.float32)
    t2 = jax.random.randint(kt2, (B2,), 0, C, dtype=jnp.int32)
    batch2 = (x2, t2)
    loss2, (w2, b2) = iter_step(params, batch2, lr=lr, train=True, tile_batch=8)
    jax.block_until_ready((loss2, w2, b2))
    ref_loss2, (ref_w2, ref_b2) = _reference(params, batch2, lr, True)
    assert jnp.allclose(loss2, ref_loss2, atol=1e-2, rtol=1e-2)
    assert jnp.allclose(w2, ref_w2, atol=1e-2, rtol=1e-2)
    assert jnp.allclose(b2, ref_b2, atol=1e-2, rtol=1e-2)

    print("KERNEL_OK")
</pallas_src>

<mosaic_0001>
module attributes {stable_mosaic.version = 11 : i64} {
  func.func @_iter_step_kernel(%arg0: i32, %arg1: memref<8x32xbf16, #tpu.memory_space<vmem>>, %arg2: memref<8x1xi32, #tpu.memory_space<vmem>>, %arg3: memref<32x128xf32, #tpu.memory_space<vmem>>, %arg4: memref<1x128xf32, #tpu.memory_space<vmem>>, %arg5: memref<1x1xf32, #tpu.memory_space<vmem>>, %arg6: memref<32x128xf32, #tpu.memory_space<vmem>>, %arg7: memref<1x128xf32, #tpu.memory_space<vmem>>, %arg8: memref<32x128xbf16, #tpu.memory_space<vmem>>, %arg9: memref<32x128xf32, #tpu.memory_space<vmem>>, %arg10: memref<1x128xf32, #tpu.memory_space<vmem>>, %arg11: memref<1x1xf32, #tpu.memory_space<vmem>>) attributes {dimension_semantics = [#tpu.dimension_semantics<arbitrary>], iteration_bounds = array<i64: 1>, scalar_prefetch = 0 : i64, scratch_operands = 4 : i64, tpu.core_type = #tpu.core_type<tc>, window_params = [{transform_indices = @transform_0, window_bounds = array<i64: 8, 32>}, {transform_indices = @transform_1, window_bounds = array<i64: 8, 1>}, {pipeline_mode = #tpu.pipeline_mode<synchronous>, transform_indices = @transform_2, window_bounds = array<i64: 32, 128>}, {pipeline_mode = #tpu.pipeline_mode<synchronous>, transform_indices = @transform_3, window_bounds = array<i64: 1, 128>}, {pipeline_mode = #tpu.pipeline_mode<synchronous>, transform_indices = @transform_4, window_bounds = array<i64: 1, 1>}, {pipeline_mode = #tpu.pipeline_mode<synchronous>, transform_indices = @transform_5, window_bounds = array<i64: 32, 128>}, {pipeline_mode = #tpu.pipeline_mode<synchronous>, transform_indices = @transform_6, window_bounds = array<i64: 1, 128>}]} {
    %c0_i32 = arith.constant 0 : i32
    %0 = arith.cmpi eq, %arg0, %c0_i32 : i32
    %1 = arith.extui %0 : i1 to i32
    %c0_i32_0 = arith.constant 0 : i32
    %2 = arith.cmpi ne, %1, %c0_i32_0 : i32
    scf.if %2 {
      %cst_33 = arith.constant 0.000000e+00 : f32
      %63 = vector.broadcast %cst_33 : f32 to vector<1x1xf32>
      %c0_34 = arith.constant 0 : index
      %c0_35 = arith.constant 0 : index
      %64 = vector.load %arg11[%c0_34, %c0_35] : memref<1x1xf32, #tpu.memory_space<vmem>>, vector<1x1xf32>
      tpu.vector_store %arg11[%c0_34, %c0_35], %63 {strides = array<i32>} : memref<1x1xf32, #tpu.memory_space<vmem>>, vector<1x1xf32>,
      %c0_36 = arith.constant 0 : index
      %c0_37 = arith.constant 0 : index
      %65 = vector.load %arg3[%c0_36, %c0_37] : memref<32x128xf32, #tpu.memory_space<vmem>>, vector<32x128xf32>
      %66 = arith.truncf %65 : vector<32x128xf32> to vector<32x128xbf16>
      %c0_38 = arith.constant 0 : index
      %c0_39 = arith.constant 0 : index
      %67 = vector.load %arg8[%c0_38, %c0_39] : memref<32x128xbf16, #tpu.memory_space<vmem>>, vector<32x128xbf16>
      tpu.vector_store %arg8[%c0_38, %c0_39], %66 {strides = array<i32>} : memref<32x128xbf16, #tpu.memory_space<vmem>>, vector<32x128xbf16>,
      %cst_40 = arith.constant 0.000000e+00 : f32
      %68 = vector.broadcast %cst_40 : f32 to vector<32x128xf32>
      %c0_41 = arith.constant 0 : index
      %c0_42 = arith.constant 0 : index
      %69 = vector.load %arg9[%c0_41, %c0_42] : memref<32x128xf32, #tpu.memory_space<vmem>>, vector<32x128xf32>
      tpu.vector_store %arg9[%c0_41, %c0_42], %68 {strides = array<i32>} : memref<32x128xf32, #tpu.memory_space<vmem>>, vector<32x128xf32>,
      %cst_43 = arith.constant 0.000000e+00 : f32
      %70 = vector.broadcast %cst_43 : f32 to vector<1x128xf32>
      %c0_44 = arith.constant 0 : index
      %c0_45 = arith.constant 0 : index
      %71 = vector.load %arg10[%c0_44, %c0_45] : memref<1x128xf32, #tpu.memory_space<vmem>>, vector<1x128xf32>
      tpu.vector_store %arg10[%c0_44, %c0_45], %70 {strides = array<i32>} : memref<1x128xf32, #tpu.memory_space<vmem>>, vector<1x128xf32>,
    } else {
    }
    %c0 = arith.constant 0 : index
    %c0_1 = arith.constant 0 : index
    %3 = vector.load %arg1[%c0, %c0_1] : memref<8x32xbf16, #tpu.memory_space<vmem>>, vector<8x32xbf16>
    %c0_2 = arith.constant 0 : index
    %c0_3 = arith.constant 0 : index
    %4 = vector.load %arg4[%c0_2, %c0_3] : memref<1x128xf32, #tpu.memory_space<vmem>>, vector<1x128xf32>
    %c0_4 = arith.constant 0 : index
    %c0_5 = arith.constant 0 : index
    %5 = vector.load %arg2[%c0_4, %c0_5] : memref<8x1xi32, #tpu.memory_space<vmem>>, vector<8x1xi32>
    %c0_6 = arith.constant 0 : index
    %c0_7 = arith.constant 0 : index
    %6 = vector.load %arg8[%c0_6, %c0_7] : memref<32x128xbf16, #tpu.memory_space<vmem>>, vector<32x128xbf16>
    %cst = arith.constant dense<0.000000e+00> : vector<8x128xf32>
    %7 = tpu.matmul %3, %6, %cst {dimension_numbers = #tpu.dot_dimension_numbers<[1], [0], [0], [1], [0, 0, 1, 1], [], []>} : vector<8x32xbf16>, vector<32x128xbf16>, vector<8x128xf32> -> vector<8x128xf32>
    %8 = vector.broadcast %4 : vector<1x128xf32> to vector<8x128xf32>
    %9 = arith.addf %7, %8 : vector<8x128xf32>
    %10 = tpu.iota {dimensions = array<i32: 1>} : vector<8x128xi32>
    %c8_i32 = arith.constant 8 : i32
    %11 = vector.broadcast %c8_i32 : i32 to vector<8x128xi32>
    %12 = arith.cmpi slt, %10, %11 : vector<8x128xi32>
    %cst_8 = arith.constant -1.000000e+30 : f32
    %13 = vector.broadcast %cst_8 : f32 to vector<8x128xf32>
    %14 = arith.select %12, %9, %13 : vector<8x128xi1>, vector<8x128xf32>
    %cst_9 = arith.constant dense<0xFF800000> : vector<8xf32>
    %15 = vector.multi_reduction <maximumf>, %14, %cst_9 [1] : vector<8x128xf32> to vector<8xf32>
    %16 = vector.shape_cast %15 : vector<8xf32> to vector<8x1xf32>
    %17 = vector.broadcast %16 : vector<8x1xf32> to vector<8x128xf32>
    %18 = arith.subf %14, %17 : vector<8x128xf32>
    %19 = math.exp %18 : vector<8x128xf32>
    %cst_10 = arith.constant dense<0.000000e+00> : vector<8xf32>
    %20 = vector.multi_reduction <add>, %19, %cst_10 [1] : vector<8x128xf32> to vector<8xf32>
    %21 = vector.shape_cast %20 : vector<8xf32> to vector<8x1xf32>
    %22 = vector.broadcast %5 : vector<8x1xi32> to vector<8x128xi32>
    %23 = arith.cmpi eq, %10, %22 : vector<8x128xi32>
    %24 = arith.extui %23 : vector<8x128xi1> to vector<8x128xi32>
    %25 = arith.sitofp %24 : vector<8x128xi32> to vector<8x128xf32>
    %26 = arith.mulf %25, %14 : vector<8x128xf32>
    %cst_11 = arith.constant dense<0.000000e+00> : vector<8xf32>
    %27 = vector.multi_reduction <add>, %26, %cst_11 [1] : vector<8x128xf32> to vector<8xf32>
    %28 = vector.shape_cast %27 : vector<8xf32> to vector<8x1xf32>
    %29 = math.log %21 : vector<8x1xf32>
    %30 = arith.addf %29, %16 : vector<8x1xf32>
    %31 = arith.subf %30, %28 : vector<8x1xf32>
    %c0_12 = arith.constant 0 : index
    %c0_13 = arith.constant 0 : index
    %32 = vector.load %arg11[%c0_12, %c0_13] : memref<1x1xf32, #tpu.memory_space<vmem>>, vector<1x1xf32>
    %33 = vector.shape_cast %31 : vector<8x1xf32> to vector<1x8x1xf32>
    %cst_14 = arith.constant dense<0.000000e+00> : vector<1xf32>
    %34 = vector.multi_reduction <add>, %33, %cst_14 [1, 2] : vector<1x8x1xf32> to vector<1xf32>
    %35 = vector.shape_cast %34 : vector<1xf32> to vector<1x1x1xf32>
    %36 = vector.extract %35[0, 0, 0] : f32 from vector<1x1x1xf32>
    %cst_15 = arith.constant 1.250000e-01 : f32
    %37 = arith.mulf %36, %cst_15 : f32
    %38 = vector.broadcast %37 : f32 to vector<1x1xf32>
    %39 = arith.addf %32, %38 : vector<1x1xf32>
    %c0_16 = arith.constant 0 : index
    %c0_17 = arith.constant 0 : index
    %40 = vector.load %arg11[%c0_16, %c0_17] : memref<1x1xf32, #tpu.memory_space<vmem>>, vector<1x1xf32>
    tpu.vector_store %arg11[%c0_16, %c0_17], %39 {strides = array<i32>} : memref<1x1xf32, #tpu.memory_space<vmem>>, vector<1x1xf32>,
    %41 = tpu.reciprocal %21 {approx = true} : vector<8x1xf32> -> vector<8x1xf32>
    %42 = vector.broadcast %41 : vector<8x1xf32> to vector<8x128xf32>
    %43 = arith.mulf %19, %42 : vector<8x128xf32>
    %44 = arith.subf %43, %25 : vector<8x128xf32>
    %cst_18 = arith.constant 1.250000e-01 : f32
    %45 = vector.broadcast %cst_18 : f32 to vector<8x128xf32>
    %46 = arith.mulf %44, %45 : vector<8x128xf32>
    %c0_19 = arith.constant 0 : index
    %c0_20 = arith.constant 0 : index
    %47 = vector.load %arg9[%c0_19, %c0_20] : memref<32x128xf32, #tpu.memory_space<vmem>>, vector<32x128xf32>
    %48 = arith.truncf %46 : vector<8x128xf32> to vector<8x128xbf16>
    %cst_21 = arith.constant dense<0.000000e+00> : vector<32x128xf32>
    %49 = tpu.matmul %3, %48, %cst_21 {dimension_numbers = #tpu.dot_dimension_numbers<[0], [0], [1], [1], [0, 1, 1, 1], [], []>} : vector<8x32xbf16>, vector<8x128xbf16>, vector<32x128xf32> -> vector<32x128xf32>
    %50 = arith.addf %47, %49 : vector<32x128xf32>
    %c0_22 = arith.constant 0 : index
    %c0_23 = arith.constant 0 : index
    %51 = vector.load %arg9[%c0_22, %c0_23] : memref<32x128xf32, #tpu.memory_space<vmem>>, vector<32x128xf32>
    tpu.vector_store %arg9[%c0_22, %c0_23], %50 {strides = array<i32>} : memref<32x128xf32, #tpu.memory_space<vmem>>, vector<32x128xf32>,
    %c0_24 = arith.constant 0 : index
    %c0_25 = arith.constant 0 : index
    %52 = vector.load %arg10[%c0_24, %c0_25] : memref<1x128xf32, #tpu.memory_space<vmem>>, vector<1x128xf32>
    %cst_26 = arith.constant dense<0.000000e+00> : vector<128xf32>
    %53 = vector.multi_reduction <add>, %46, %cst_26 [0] : vector<8x128xf32> to vector<128xf32>
    %54 = vector.shape_cast %53 : vector<128xf32> to vector<1x128xf32>
    %55 = arith.addf %52, %54 : vector<1x128xf32>
    %c0_27 = arith.constant 0 : index
    %c0_28 = arith.constant 0 : index
    %56 = vector.load %arg10[%c0_27, %c0_28] : memref<1x128xf32, #tpu.memory_space<vmem>>, vector<1x128xf32>
    tpu.vector_store %arg10[%c0_27, %c0_28], %55 {strides = array<i32>} : memref<1x128xf32, #tpu.memory_space<vmem>>, vector<1x128xf32>,
    %c0_i32_29 = arith.constant 0 : i32
    %57 = arith.cmpi eq, %arg0, %c0_i32_29 : i32
    %58 = arith.extui %57 : i1 to i32
    %c0_i32_30 = arith.constant 0 : i32
    %59 = arith.cmpi ne, %58, %c0_i32_30 : i32
    scf.if %59 {
      %c0_33 = arith.constant 0 : index
      %c0_34 = arith.constant 0 : index
      %63 = vector.load %arg3[%c0_33, %c0_34] : memref<32x128xf32, #tpu.memory_space<vmem>>, vector<32x128xf32>
      %c0_35 = arith.constant 0 : index
      %c0_36 = arith.constant 0 : index
      %64 = vector.load %arg9[%c0_35, %c0_36] : memref<32x128xf32, #tpu.memory_space<vmem>>, vector<32x128xf32>
      %cst_37 = arith.constant 1.000000e-01 : f32
      %65 = vector.broadcast %cst_37 : f32 to vector<32x128xf32>
      %66 = arith.mulf %65, %64 : vector<32x128xf32>
      %67 = arith.subf %63, %66 : vector<32x128xf32>
      %c0_38 = arith.constant 0 : index
      %c0_39 = arith.constant 0 : index
      %68 = vector.load %arg6[%c0_38, %c0_39] : memref<32x128xf32, #tpu.memory_space<vmem>>, vector<32x128xf32>
      tpu.vector_store %arg6[%c0_38, %c0_39], %67 {strides = array<i32>} : memref<32x128xf32, #tpu.memory_space<vmem>>, vector<32x128xf32>,
      %c0_40 = arith.constant 0 : index
      %c0_41 = arith.constant 0 : index
      %69 = vector.load %arg10[%c0_40, %c0_41] : memref<1x128xf32, #tpu.memory_space<vmem>>, vector<1x128xf32>
      %cst_42 = arith.constant 1.000000e-01 : f32
      %70 = vector.broadcast %cst_42 : f32 to vector<1x128xf32>
      %71 = arith.mulf %70, %69 : vector<1x128xf32>
      %72 = arith.subf %4, %71 : vector<1x128xf32>
      %c0_43 = arith.constant 0 : index
      %c0_44 = arith.constant 0 : index
      %73 = vector.load %arg7[%c0_43, %c0_44] : memref<1x128xf32, #tpu.memory_space<vmem>>, vector<1x128xf32>
      tpu.vector_store %arg7[%c0_43, %c0_44], %72 {strides = array<i32>} : memref<1x128xf32, #tpu.memory_space<vmem>>, vector<1x128xf32>,
    } else {
    }
    %c0_i32_31 = arith.constant 0 : i32
    %60 = arith.cmpi eq, %arg0, %c0_i32_31 : i32
    %61 = arith.extui %60 : i1 to i32
    %c0_i32_32 = arith.constant 0 : i32
    %62 = arith.cmpi ne, %61, %c0_i32_32 : i32
    scf.if %62 {
      %c0_33 = arith.constant 0 : index
      %c0_34 = arith.constant 0 : index
      %63 = vector.load %arg11[%c0_33, %c0_34] : memref<1x1xf32, #tpu.memory_space<vmem>>, vector<1x1xf32>
      %c0_35 = arith.constant 0 : index
      %c0_36 = arith.constant 0 : index
      %64 = vector.load %arg5[%c0_35, %c0_36] : memref<1x1xf32, #tpu.memory_space<vmem>>, vector<1x1xf32>
      tpu.vector_store %arg5[%c0_35, %c0_36], %63 {strides = array<i32>} : memref<1x1xf32, #tpu.memory_space<vmem>>, vector<1x1xf32>,
    } else {
    }
    return
  }
  func.func @transform_0(%arg0: i32) -> (i32, i32) {
    %c0_i32 = arith.constant 0 : i32
    %c0_i32_0 = arith.constant 0 : i32
    return %arg0, %c0_i32 : i32, i32
  }
  func.func @transform_1(%arg0: i32) -> (i32, i32) {
    %c0_i32 = arith.constant 0 : i32
    %c0_i32_0 = arith.constant 0 : i32
    return %arg0, %c0_i32 : i32, i32
  }
  func.func @transform_2(%arg0: i32) -> (i32, i32) {
    %c0_i32 = arith.constant 0 : i32
    %c0_i32_0 = arith.constant 0 : i32
    %c0_i32_1 = arith.constant 0 : i32
    return %c0_i32, %c0_i32_0 : i32, i32
  }
  func.func @transform_3(%arg0: i32) -> (i32, i32) {
    %c0_i32 = arith.constant 0 : i32
    %c0_i32_0 = arith.constant 0 : i32
    %c0_i32_1 = arith.constant 0 : i32
    return %c0_i32, %c0_i32_0 : i32, i32
  }
  func.func @transform_4(%arg0: i32) -> (i32, i32) {
    %c0_i32 = arith.constant 0 : i32
    %c0_i32_0 = arith.constant 0 : i32
    %c0_i32_1 = arith.constant 0 : i32
    return %c0_i32, %c0_i32_0 : i32, i32
  }
  func.func @transform_5(%arg0: i32) -> (i32, i32) {
    %c0_i32 = arith.constant 0 : i32
    %c0_i32_0 = arith.constant 0 : i32
    %c0_i32_1 = arith.constant 0 : i32
    return %c0_i32, %c0_i32_0 : i32, i32
  }
  func.func @transform_6(%arg0: i32) -> (i32, i32) {
    %c0_i32 = arith.constant 0 : i32
    %c0_i32_0 = arith.constant 0 : i32
    %c0_i32_1 = arith.constant 0 : i32
    return %c0_i32, %c0_i32_0 : i32, i32
  }
}

</mosaic_0001>

<llo_original>
// kernel: tpu_custom_call.1
$region0: #{tpu_custom_call.1}
  #allocation0 [shape = 'u32[]', space=smem, size = 0x4, offset = 0x4, fixed_abs, tag = 'smem constant byte address 0x4 - core index']
  #allocation1 [shape = 'u32[144,128]{1,0:T(1,128)}', space=vmem, size = 0x12000, scoped, tag = 'internal scratch']
  #allocation2 [shape = 'bf16[32,128]{1,0:T(16,128)(2,1)}', space=vmem, size = 0x2000, scoped, tag = 'scratch operand']
  #allocation3 [shape = 'f32[32,128]{1,0:T(8,128)}', space=vmem, size = 0x4000, scoped, tag = 'scratch operand']
  #allocation4 [shape = 'f32[1,128]{1,0:T(1,128)}', space=vmem, size = 0x200, scoped, tag = 'scratch operand']
  #allocation5 [shape = 'f32[1,1]{1,0:T(1,128)}', space=vmem, size = 0x200, scoped, tag = 'scratch operand']
  %s0 = inlined_call_operand.vmem [shape: bf16[8,32], index: 0, kind: input, shape index: {}]
  %s1 = inlined_call_operand.vmem [shape: s32[8,1], index: 1, kind: input, shape index: {}]
  %s2 = inlined_call_operand.hbm [shape: f32[32,128], index: 2, kind: input, shape index: {}, may-alias: {2,5}]
  %s3 = inlined_call_operand.hbm [shape: f32[1,128], index: 3, kind: input, shape index: {}, may-alias: {3,6}]
  %s4 = inlined_call_operand.hbm [shape: f32[1,1], index: 4, kind: output, shape index: {0}]
  %s5 = inlined_call_operand.hbm [shape: f32[32,128], index: 5, kind: output, shape index: {1}, may-alias: {2,5}]
  %s6 = inlined_call_operand.hbm [shape: f32[1,128], index: 6, kind: output, shape index: {2}, may-alias: {3,6}]
  %7 = xla_tuple %s4, %s5, %s6
  %s8 = sld [smem:[#allocation0]]
  $region58: #{tpu_custom_call.1} parent=0
    _
  %s10 = ssub.s32 1, %s8
  %s11 = scalar_select 0, %s10, %s8
  $region1: #{tpu_custom_call.1} parent=0
    #allocation6 [shape = 'u8[16384]{0}', space=vmem, size = 0x4000, scoped, tag = 'input window, operand 2, single buffered']
    #allocation7 [shape = 's32[1]{0}', space=sflag, size = 0x4, scoped, tag = 'scoped memory for tpu_custom_call.1']
    #allocation8 [shape = 's32[1]{0}', space=sflag, size = 0x4, scoped, tag = 'scoped memory for tpu_custom_call.1']
    #allocation9 [shape = 'u8[512]{0}', space=vmem, size = 0x400, scoped, tag = 'input window, operand 3, single buffered']
    #allocation10 [shape = 's32[1]{0}', space=sflag, size = 0x4, scoped, tag = 'scoped memory for tpu_custom_call.1']
    #allocation11 [shape = 'u8[512]{0}', space=vmem, size = 0x400, scoped, tag = 'output window, operand 0, single buffered']
    #allocation12 [shape = 'u8[16384]{0}', space=vmem, size = 0x4000, scoped, tag = 'output window, operand 1, single buffered']
    #allocation13 [shape = 's32[1]{0}', space=sflag, size = 0x4, scoped, tag = 'scoped memory for tpu_custom_call.1']
    #allocation14 [shape = 'u8[512]{0}', space=vmem, size = 0x400, scoped, tag = 'output window, operand 2, single buffered']
    %12 = vsyncpa [#allocation7], 0
    %13 = vsyncpa [#allocation10], 0
    %14 = vsyncpa [#allocation8], 0
    %15 = vsyncpa [#allocation13], 0
    // Predicated region
    $region2: #{tpu_custom_call.1} parent=1 // pred_check
      _
    $region3: #{tpu_custom_call.1} parent=1 // pred_check_branch
      %17 = sbr.rel (0) target = $region5
    $region4: #{tpu_custom_call.1} parent=1 // pred_region
      _
    $region5: #{tpu_custom_call.1} parent=1 // pred_fallthru
      _
    // Predicated region
    $region6: #{tpu_custom_call.1} parent=1 // pred_check
      _
    $region7: #{tpu_custom_call.1} parent=1 // pred_check_branch
      %19 = sbr.rel (0) target = $region9
    $region8: #{tpu_custom_call.1} parent=1 // pred_region
      _
    $region9: #{tpu_custom_call.1} parent=1 // pred_fallthru
      _
    // Predicated region
    $region10: #{tpu_custom_call.1} parent=1 // pred_check
      _
    $region11: #{tpu_custom_call.1} parent=1 // pred_check_branch
      %21 = sbr.rel (0) target = $region13
    $region12: #{tpu_custom_call.1} parent=1 // pred_region
      %s23 = ssub.s32 512, 512
      %24 = vsyncadd [#allocation7], %s23
      %s25 = sshll.u32 [#allocation6], 4
      %s26 = int_to_ptr.vmem [resolvable:$true] %s25
      %31 = dma.hbm_to_vmem [thread:$0]  %s2, 512, %s26, [#allocation7], 128, 128, 8
    $region13: #{tpu_custom_call.1} parent=1 // pred_fallthru
      _
    // Predicated region
    $region14: #{tpu_custom_call.1} parent=1 // pred_check
      _
    $region15: #{tpu_custom_call.1} parent=1 // pred_check_branch
      %33 = sbr.rel (0) target = $region17
    $region16: #{tpu_custom_call.1} parent=1 // pred_region
      %s35 = ssub.s32 16, 16
      %36 = vsyncadd [#allocation10], %s35
      %s38 = sshll.u32 [#allocation9], 4
      %s39 = int_to_ptr.vmem [resolvable:$true] %s38
      %41 = dma.hbm_to_vmem [thread:$0]  %s3, 16, %s39, [#allocation10]
    $region17: #{tpu_custom_call.1} parent=1 // pred_fallthru
      _
    // Predicated region
    $region18: #{tpu_custom_call.1} parent=1 // pred_check
      _
    $region19: #{tpu_custom_call.1} parent=1 // pred_check_branch
      %43 = sbr.rel (0) target = $region21
    $region20: #{tpu_custom_call.1} parent=1 // pred_region
      %44 = dma.done [#allocation7], 512
    $region21: #{tpu_custom_call.1} parent=1 // pred_fallthru
      _
    // Predicated region
    $region22: #{tpu_custom_call.1} parent=1 // pred_check
      _
    $region23: #{tpu_custom_call.1} parent=1 // pred_check_branch
      %46 = sbr.rel (0) target = $region25
    $region24: #{tpu_custom_call.1} parent=1 // pred_region
      %47 = dma.done [#allocation10], 16
    $region25: #{tpu_custom_call.1} parent=1 // pred_fallthru
      _
    %p49 = scmp.eq.s32.totalorder 0, 0
    // Predicated region
    $region26: #{tpu_custom_call.1} parent=1 // pred_check
      %p50 = pneg %p49
    $region27: #{tpu_custom_call.1} parent=1 // pred_check_branch
      %52 = sbr.rel (%p50) target = $region29
    $region28: #{tpu_custom_call.1} parent=1 // pred_region
      %vm53 = vcmask 0
      %54 = vst.msk [vmem:[#allocation5] sm:$0x1] %vm53, 0.0
      %v55 = vld [vmem:[#allocation6] sm:$0xff]
      %v56 = vld [vmem:[#allocation6 + $0x8] sm:$0xff]
      %v57 = vld [vmem:[#allocation6 + $0x10] sm:$0xff]
      %v58 = vld [vmem:[#allocation6 + $0x18] sm:$0xff]
      %v59 = vpack.c.bf16 %v56, %v55
      %v60 = vpack.c.bf16 %v58, %v57
      %61 = vst [vmem:[#allocation2] sm:$0xff] %v59
      %62 = vst [vmem:[#allocation2 + $0x8] sm:$0xff] %v60
      %63 = vst [vmem:[#allocation3] sm:$0xff] 0.0
      %64 = vst [vmem:[#allocation3 + $0x8] sm:$0xff] 0.0
      %65 = vst [vmem:[#allocation3 + $0x10] sm:$0xff] 0.0
      %66 = vst [vmem:[#allocation3 + $0x18] sm:$0xff] 0.0
      %67 = vst [vmem:[#allocation4] sm:$0x1] 0.0
    $region29: #{tpu_custom_call.1} parent=1 // pred_fallthru
      _
    %v68 = vld [vmem:[%s0] sm:$0xf]
    %v69 = vld [vmem:[#allocation9] sm:$0x1]
    %v70 = vld [vmem:[%s1] sm:$0xff]
    %v71 = vld [vmem:[#allocation2] sm:$0xff]
    %v72 = vld [vmem:[#allocation2 + $0x8] sm:$0xff]
    %v74 = vlaneseq
    %v75 = vshrl.u32 %v74, 7
    %v76 = vsub.s32 0, %v75
    %v77 = vrot.slane %v69, %v76
    %vm79 = vcmask 261120
    %v81 = vsel %vm79, %v68, 0
    %83 = vmatprep.subr.bf16.mxu0 0
    %84 = vmatpush1.bf16.msra.mxu0 %v71
    %85 = vmatprep.subr.bf16.mxu0 0
    %86 = vmatpush1.bf16.msra.mxu0 %v72
    %87 = vmatprep.subr.bf16.mxu0 0
    %88 = vmatpush1.bf16.msra.mxu0 0
    %89 = vmatprep.subr.bf16.mxu0 0
    %90 = vmatpush1.bf16.msra.mxu0 0
    %91 = vmatprep.subr.bf16.mxu0 0
    %92 = vmatpush1.bf16.msra.mxu0 0
    %93 = vmatprep.subr.bf16.mxu0 0
    %94 = vmatpush1.bf16.msra.mxu0 0
    %95 = vmatprep.subr.bf16.mxu0 0
    %96 = vmatpush1.bf16.msra.mxu0 0
    %97 = vmatprep.subr.bf16.mxu0 0
    %98 = vmatpush1.bf16.msra.mxu0 0
    %99 = vmatprep.subr.bf16.mxu0 0
    %100 = vmatpush1.bf16.msra.mxu0 0
    %101 = vmatprep.subr.bf16.mxu0 0
    %102 = vmatpush1.bf16.msra.mxu0 0
    %103 = vmatprep.subr.bf16.mxu0 0
    %104 = vmatpush1.bf16.msra.mxu0 0
    %105 = vmatprep.subr.bf16.mxu0 0
    %106 = vmatpush1.bf16.msra.mxu0 0
    %107 = vmatprep.subr.bf16.mxu0 0
    %108 = vmatpush1.bf16.msra.mxu0 0
    %109 = vmatprep.subr.bf16.mxu0 0
    %110 = vmatpush1.bf16.msra.mxu0 0
    %111 = vmatprep.subr.bf16.mxu0 0
    %112 = vmatpush1.bf16.msra.mxu0 0
    %113 = vmatprep.subr.bf16.mxu0 0
    %114 = vmatpush1.bf16.msra.mxu0 0
    %115 = vmatprep.mubr.bf16.mxu0 0
    %116 = vmatmul.mubr.bf16.gmra.mrb[0].mxu0 %v81
    %v117 = vpop.f32.mrb[0].mxu0
    %v118 = vadd.f32 %v77, %v117
    %v119 = vpop.f32.mrb[0].mxu0
    %v120 = vpop.f32.mrb[0].mxu0
    %v121 = vpop.f32.mrb[0].mxu0
    %122 = vdwg.mxu0
    %v123 = vlaneseq
    %v124 = vand.u32 %v123, 127
    %vm125 = vcmp.lt.s32.totalorder %v124, 8
    %v126 = vsel %vm125, %v118, -1e+30
    %127 = vmax.xlane.f32.xlu0 %v126
    %v128 = vpop.xlane.xlu0 %127
    %v129 = vsub.f32 %v126, %v128
    %v130 = vmul.f32 %v129, 1.442695
    %v131 = vpow.pop %v130
    %132 = vadd.xlane.f32.xlu0 %v131
    %v133 = vpop.xlane.xlu0 %132
    %134 = vset.pattern.permute.xlu0 0
    %135 = vperm.xlu0 %134, %v70
    %v136 = vpop.permute.xlu0 %135
    %vm137 = vcmp.eq.s32.totalorder %v124, %v136
    %v138 = vsel %vm137, 1, 0
    %v139 = vcvt.s32.f32 %v138
    %v140 = vmul.f32 %v139, %v126
    %141 = vadd.xlane.f32.xlu0 %v140
    %v142 = vpop.xlane.xlu0 %141
    %v143 = vlog2.pop %v133
    %v144 = vmul.f32 %v143, 0.6931472
    %v145 = vadd.f32 %v144, %v128
    %v146 = vsub.f32 %v145, %v142
    %v147 = vld [vmem:[#allocation5] sm:$0x1]
    %vm148 = vcmask 7168
    %v149 = vsel %vm148, %v146, 0.0
    %150 = vadd.xlane.f32.xlu0 %v149
    %v151 = vpop.xlane.xlu0 %150
    %v152 = vrot.slane %v151, 4
    %v153 = vadd.f32 %v151, %v152
    %v154 = vrot.slane %v153, 2
    %v155 = vadd.f32 %v153, %v154
    %v156 = vrot.slane %v155, 1
    %v157 = vadd.f32 %v155, %v156
    %s158 = vtos %v157
    %s159 = smul.f32 %s158, 0.125
    %v160 = vstv %s159
    %v161 = vadd.f32 %v147, %v160
    %vm162 = vcmask 0
    %163 = vst.msk [vmem:[#allocation5] sm:$0x1] %vm162, %v161
    %v164 = vrcp.pop %v133
    %v165 = vmul.f32 %v131, %v164
    %v166 = vsub.f32 %v165, %v139
    %v167 = vmul.f32 %v166, 0.125
    %v168 = vld [vmem:[#allocation3] sm:$0xff]
    %v169 = vld [vmem:[#allocation3 + $0x8] sm:$0xff]
    %v170 = vld [vmem:[#allocation3 + $0x10] sm:$0xff]
    %v171 = vld [vmem:[#allocation3 + $0x18] sm:$0xff]
    %v172 = vpack.c.bf16 %v167, %v167
    %173 = vxpose.xlu0.c.b16.start [1/8] %v68, 128
    %174 = vxpose.xlu0.c.b16.cont [2/8] 0, 128
    %175 = vxpose.xlu0.c.b16.cont [3/8] 0, 128
    %176 = vxpose.xlu0.c.b16.cont [4/8] 0, 128
    %177 = vxpose.xlu0.c.b16.cont [5/8] 0, 128
    %178 = vxpose.xlu0.c.b16.cont [6/8] 0, 128
    %179 = vxpose.xlu0.c.b16.cont [7/8] 0, 128
    %180 = vxpose.xlu0.c.b16.end [8/8] 0, 128
    %v181 = vpop.trf.xlu0
    %v182 = vpop.trf.xlu0
    %v183 = vpop.trf.xlu0
    %v184 = vpop.trf.xlu0
    %v185 = vpop.trf.xlu0
    %v186 = vpop.trf.xlu0
    %v187 = vpop.trf.xlu0
    %v188 = vpop.trf.xlu0
    %vm189 = vcmask 64512
    %v191 = vsel %vm189, %v181, 0
    %v194 = vsel %vm189, %v182, 0
    %vm196 = vcmask 1043456
    %v198 = vsel %vm196, %v172, 0
    %200 = vmatprep.subr.bf16.mxu0 0
    %201 = vmatpush1.bf16.msra.mxu0 %v198
    %202 = vmatprep.subr.bf16.mxu0 0
    %203 = vmatpush1.bf16.msra.mxu0 0
    %204 = vmatprep.subr.bf16.mxu0 0
    %205 = vmatpush1.bf16.msra.mxu0 0
    %206 = vmatprep.subr.bf16.mxu0 0
    %207 = vmatpush1.bf16.msra.mxu0 0
    %208 = vmatprep.subr.bf16.mxu0 0
    %209 = vmatpush1.bf16.msra.mxu0 0
    %210 = vmatprep.subr.bf16.mxu0 0
    %211 = vmatpush1.bf16.msra.mxu0 0
    %212 = vmatprep.subr.bf16.mxu0 0
    %213 = vmatpush1.bf16.msra.mxu0 0
    %214 = vmatprep.subr.bf16.mxu0 0
    %215 = vmatpush1.bf16.msra.mxu0 0
    %216 = vmatprep.subr.bf16.mxu0 0
    %217 = vmatpush1.bf16.msra.mxu0 0
    %218 = vmatprep.subr.bf16.mxu0 0
    %219 = vmatpush1.bf16.msra.mxu0 0
    %220 = vmatprep.subr.bf16.mxu0 0
    %221 = vmatpush1.bf16.msra.mxu0 0
    %222 = vmatprep.subr.bf16.mxu0 0
    %223 = vmatpush1.bf16.msra.mxu0 0
    %224 = vmatprep.subr.bf16.mxu0 0
    %225 = vmatpush1.bf16.msra.mxu0 0
    %226 = vmatprep.subr.bf16.mxu0 0
    %227 = vmatpush1.bf16.msra.mxu0 0
    %228 = vmatprep.subr.bf16.mxu0 0
    %229 = vmatpush1.bf16.msra.mxu0 0
    %230 = vmatprep.subr.bf16.mxu0 0
    %231 = vmatpush1.bf16.msra.mxu0 0
    %232 = vmatprep.mubr.bf16.mxu0 0
    %233 = vmatmul.mubr.bf16.gmra.mrb[0].mxu0 %v191
    %v234 = vpop.f32.mrb[0].mxu0
    %v235 = vadd.f32 0.0, %v234
    %v236 = vpop.f32.mrb[0].mxu0
    %v237 = vpop.f32.mrb[0].mxu0
    %v238 = vadd.f32 0.0, %v237
    %v239 = vpop.f32.mrb[0].mxu0
    %240 = vmatprep.mubr.bf16.mxu0 0
    %241 = vmatmul.mubr.bf16.gmra.mrb[0].mxu0 %v194
    %v242 = vpop.f32.mrb[0].mxu0
    %v243 = vadd.f32 0.0, %v242
    %v244 = vpop.f32.mrb[0].mxu0
    %v245 = vpop.f32.mrb[0].mxu0
    %v246 = vadd.f32 0.0, %v245
    %v247 = vpop.f32.mrb[0].mxu0
    %248 = vdwg.mxu0
    %v249 = vadd.f32 %v168, %v235
    %v250 = vadd.f32 %v169, %v238
    %v251 = vadd.f32 %v170, %v243
    %v252 = vadd.f32 %v171, %v246
    %253 = vst [vmem:[#allocation3] sm:$0xff] %v249
    %254 = vst [vmem:[#allocation3 + $0x8] sm:$0xff] %v250
    %255 = vst [vmem:[#allocation3 + $0x10] sm:$0xff] %v251
    %256 = vst [vmem:[#allocation3 + $0x18] sm:$0xff] %v252
    %v257 = vld [vmem:[#allocation4] sm:$0x1]
    %v258 = vrot.slane %v167, 4
    %v259 = vadd.f32 %v167, %v258
    %v260 = vrot.slane %v259, 2
    %v261 = vadd.f32 %v259, %v260
    %v262 = vrot.slane %v261, 1
    %v263 = vadd.f32 %v261, %v262
    %v264 = vadd.f32 %v257, %v263
    %265 = vst [vmem:[#allocation4] sm:$0x1] %v264
    // Predicated region
    $region30: #{tpu_custom_call.1} parent=1 // pred_check
      %p266 = pneg %p49
    $region31: #{tpu_custom_call.1} parent=1 // pred_check_branch
      %268 = sbr.rel (%p266) target = $region33
    $region32: #{tpu_custom_call.1} parent=1 // pred_region
      %v269 = vld [vmem:[#allocation6] sm:$0xff]
      %v270 = vld [vmem:[#allocation6 + $0x8] sm:$0xff]
      %v271 = vld [vmem:[#allocation6 + $0x10] sm:$0xff]
      %v272 = vld [vmem:[#allocation6 + $0x18] sm:$0xff]
      %v273 = vld [vmem:[#allocation3] sm:$0xff]
      %v274 = vld [vmem:[#allocation3 + $0x8] sm:$0xff]
      %v275 = vld [vmem:[#allocation3 + $0x10] sm:$0xff]
      %v276 = vld [vmem:[#allocation3 + $0x18] sm:$0xff]
      %v277 = vmul.f32 %v273, 0.1
      %v278 = vmul.f32 %v274, 0.1
      %v279 = vmul.f32 %v275, 0.1
      %v280 = vmul.f32 %v276, 0.1
      %v281 = vsub.f32 %v269, %v277
      %v282 = vsub.f32 %v270, %v278
      %v283 = vsub.f32 %v271, %v279
      %v284 = vsub.f32 %v272, %v280
      %285 = vst [vmem:[#allocation12] sm:$0xff] %v281
      %286 = vst [vmem:[#allocation12 + $0x8] sm:$0xff] %v282
      %287 = vst [vmem:[#allocation12 + $0x10] sm:$0xff] %v283
      %288 = vst [vmem:[#allocation12 + $0x18] sm:$0xff] %v284
      %v289 = vld [vmem:[#allocation4] sm:$0x1]
      %v290 = vmul.f32 %v289, 0.1
      %v291 = vsub.f32 %v69, %v290
      %292 = vst [vmem:[#allocation14] sm:$0x1] %v291
      %v293 = vld [vmem:[#allocation5] sm:$0x1]
      %294 = vst.msk [vmem:[#allocation11] sm:$0x1] %vm162, %v293
    $region33: #{tpu_custom_call.1} parent=1 // pred_fallthru
      _
    // Predicated region
    $region34: #{tpu_custom_call.1} parent=1 // pred_check
      _
    $region35: #{tpu_custom_call.1} parent=1 // pred_check_branch
      %296 = sbr.rel (0) target = $region37
    $region36: #{tpu_custom_call.1} parent=1 // pred_region
      %s298 = ssub.s32 16, 16
      %299 = vsyncadd [#allocation8], %s298
      %s301 = sshll.u32 [#allocation11], 4
      %s302 = int_to_ptr.vmem [resolvable:$true] %s301
      %304 = dma.vmem_to_hbm [thread:$0]  %s302, 16, %s4, [#allocation8]
    $region37: #{tpu_custom_call.1} parent=1 // pred_fallthru
      _
    // Predicated region
    $region38: #{tpu_custom_call.1} parent=1 // pred_check
      _
    $region39: #{tpu_custom_call.1} parent=1 // pred_check_branch
      %306 = sbr.rel (0) target = $region41
    $region40: #{tpu_custom_call.1} parent=1 // pred_region
      %s308 = ssub.s32 512, 512
      %309 = vsyncadd [#allocation13], %s308
      %s310 = sshll.u32 [#allocation12], 4
      %s311 = int_to_ptr.vmem [resolvable:$true] %s310
      %316 = dma.vmem_to_hbm [thread:$0]  %s311, 512, %s5, [#allocation13], 128, 128, 8
    $region41: #{tpu_custom_call.1} parent=1 // pred_fallthru
      _
    // Predicated region
    $region42: #{tpu_custom_call.1} parent=1 // pred_check
      _
    $region43: #{tpu_custom_call.1} parent=1 // pred_check_branch
      %318 = sbr.rel (0) target = $region45
    $region44: #{tpu_custom_call.1} parent=1 // pred_region
      %s320 = ssub.s32 16, 16
      %321 = vsyncadd [#allocation13], %s320
      %s323 = sshll.u32 [#allocation14], 4
      %s324 = int_to_ptr.vmem [resolvable:$true] %s323
      %326 = dma.vmem_to_hbm [thread:$0]  %s324, 16, %s6, [#allocation13]
    $region45: #{tpu_custom_call.1} parent=1 // pred_fallthru
      _
    // Predicated region
    $region46: #{tpu_custom_call.1} parent=1 // pred_check
      _
    $region47: #{tpu_custom_call.1} parent=1 // pred_check_branch
      %328 = sbr.rel (0) target = $region49
    $region48: #{tpu_custom_call.1} parent=1 // pred_region
      %329 = dma.done [#allocation8], 16
    $region49: #{tpu_custom_call.1} parent=1 // pred_fallthru
      _
    // Predicated region
    $region50: #{tpu_custom_call.1} parent=1 // pred_check
      _
    $region51: #{tpu_custom_call.1} parent=1 // pred_check_branch
      %331 = sbr.rel (0) target = $region53
    $region52: #{tpu_custom_call.1} parent=1 // pred_region
      %332 = dma.done [#allocation13], 512
    $region53: #{tpu_custom_call.1} parent=1 // pred_fallthru
      _
    // Predicated region
    $region54: #{tpu_custom_call.1} parent=1 // pred_check
      _
    $region55: #{tpu_custom_call.1} parent=1 // pred_check_branch
      %334 = sbr.rel (0) target = $region57
    $region56: #{tpu_custom_call.1} parent=1 // pred_region
      %335 = dma.done [#allocation13], 16
    $region57: #{tpu_custom_call.1} parent=1 // pred_fallthru
      _
    %336 = vsyncpa [#allocation7], 1
    %337 = vsyncpa [#allocation10], 1
    %338 = vsyncpa [#allocation8], 1
    %339 = vsyncpa [#allocation13], 1

</llo_original>
